<compile_context>
chip_gen: v7x
topology: tpu7x:2x2x1
jax: 0.10.0
libtpu: 0.0.40
codegen_flags: <defaults>
</compile_context>

<pallas_src>
import functools

import jax
import jax.numpy as jnp
from jax.experimental import pallas as pl
from jax.experimental.pallas import tpu as pltpu


def _round_up(a, b):
    return (a + b - 1) // b * b


# ----------------------------------------------------------------------------
# Kernels
# ----------------------------------------------------------------------------
def _ln_stats(x_f32, inv_h, eps):
    """Fused one-pass mean/var (padded lanes are zero, so sums stay exact)."""
    sx = jnp.sum(x_f32, axis=-1, keepdims=True)            # (rows, 1)
    sxx = jnp.sum(x_f32 * x_f32, axis=-1, keepdims=True)   # (rows, 1)
    u = sx * inv_h
    var = jnp.maximum(sxx * inv_h - u * u, 0.0)
    return (x_f32 - u) * jax.lax.rsqrt(var + eps)


def _ln_kernel(x_ref, g_ref, b_ref, o_ref, *, eps, inv_h):
    """Plain path: out = gamma * xhat + beta."""
    x = x_ref[...].astype(jnp.float32)                      # (rows, Hp)
    xhat = _ln_stats(x, inv_h, eps)
    g = g_ref[...].astype(jnp.float32)                      # (1, Hp)
    b = b_ref[...].astype(jnp.float32)                      # (1, Hp)
    o_ref[...] = (g * xhat + b).astype(o_ref.dtype)


def _ln_cond_kernel(x_ref, w_ref, wwT_ref, bw_ref, wbT_ref, bb_ref, o_ref,
                    *, eps, inv_h):
    """Conditional path: out = (weight @ Ww.T + bw) * xhat + (weight @ Wb.T + bb).
    Weights arrive pre-transposed ((in, out)), so no in-kernel transpose."""
    x = x_ref[...].astype(jnp.float32)                      # (rows, Hp)
    xhat = _ln_stats(x, inv_h, eps)

    w = w_ref[...]                                          # (rows, Hp), native dtype
    scale = jnp.dot(w, wwT_ref[...], preferred_element_type=jnp.float32) \
        + bw_ref[...].astype(jnp.float32)                   # (rows, Hp)
    shift = jnp.dot(w, wbT_ref[...], preferred_element_type=jnp.float32) \
        + bb_ref[...].astype(jnp.float32)                   # (rows, Hp)

    o_ref[...] = (scale * xhat + shift).astype(o_ref.dtype)


# ----------------------------------------------------------------------------
# Wrapper
# ----------------------------------------------------------------------------
class PallasLayerNorm:
    _TARGET_ROWS = 512                 # row tile target (multiple of 8 and 16)
    _VMEM_BUDGET = 40 * 1024 * 1024    # keep tiles under this estimate
    _VMEM_LIMIT = 48 * 1024 * 1024     # scoped VMEM limit (safe on v5e/v6e/v7x)

    def __init__(self, hidden_size, eps=1e-12, key=None, dtype=jnp.float32):
        if key is None:
            key = jax.random.PRNGKey(0)
        k1, k2, k3, k4 = jax.random.split(key, 4)
        H = hidden_size
        Hp = _round_up(H, 128)          # lane-dense hidden dim
        self.hidden_size = H
        self._hp = Hp
        self.eps = float(eps)
        self._param_itemsize = jnp.dtype(dtype).itemsize

        # nn.Parameter(torch.ones(H)), nn.Parameter(torch.zeros(H))
        self.weight = jnp.ones((H,), dtype)
        self.bias = jnp.zeros((H,), dtype)
        # nn.Linear(H, H): weight (out, in), bias (out,). Deterministic init.
        bound = 1.0 / (H ** 0.5)
        self.weight_mlp_w = jax.random.uniform(k1, (H, H), dtype, -bound, bound)
        self.weight_mlp_b = jax.random.uniform(k2, (H,), dtype, -bound, bound)
        self.bias_mlp_w = jax.random.uniform(k3, (H, H), dtype, -bound, bound)
        self.bias_mlp_b = jax.random.uniform(k4, (H,), dtype, -bound, bound)

        # Kernel-side params: zero-padded to Hp and (for matmul weights)
        # pre-transposed to (in, out) so the kernel never transposes.
        pad = Hp - H
        self._gamma_p = jnp.pad(self.weight, (0, pad)).reshape(1, Hp)
        self._beta_p = jnp.pad(self.bias, (0, pad)).reshape(1, Hp)
        self._ww_t_p = jnp.pad(self.weight_mlp_w.T, ((0, pad), (0, pad)))
        self._wb_t_p = jnp.pad(self.bias_mlp_w.T, ((0, pad), (0, pad)))
        self._bw_p = jnp.pad(self.weight_mlp_b, (0, pad)).reshape(1, Hp)
        self._bb_p = jnp.pad(self.bias_mlp_b, (0, pad)).reshape(1, Hp)

    # ------------------------------------------------------------------
    def _pick_block_rows(self, rows, itemsize, cond):
        Hp = self._hp
        sub = 16 if itemsize == 2 else 8            # sublane packing (bf16/f32)
        br = min(self._TARGET_ROWS, _round_up(rows, sub))

        def est(b):
            row_streams = 3 if cond else 2          # x (+cond), out
            e = 2 * row_streams * b * Hp * itemsize  # double-buffered row blocks
            if cond:
                e += 2 * 2 * Hp * Hp * self._param_itemsize  # resident (Hp,Hp) mats
            e += 8 * Hp * 4                          # small vectors
            return e

        while br > sub and est(br) > self._VMEM_BUDGET:
            br = max(sub, (br // 2) // sub * sub)
        return br

    # ------------------------------------------------------------------
    def __call__(self, x, weight=None):
        H, Hp = self.hidden_size, self._hp
        orig_shape = x.shape
        assert orig_shape[-1] == H
        x2 = x.reshape(-1, H)                        # (rows, H)
        rows = x2.shape[0]
        itemsize = jnp.dtype(x.dtype).itemsize

        block_rows = self._pick_block_rows(rows, itemsize, weight is not None)
        rows_p = _round_up(rows, block_rows)

        needs_pad = (Hp != H) or (rows_p != rows)
        if needs_pad:
            x2 = jnp.pad(x2, ((0, rows_p - rows), (0, Hp - H)))

        grid = (rows_p // block_rows,)
        row_spec = pl.BlockSpec((block_rows, Hp), lambda i: (i, 0))
        vec_spec = pl.BlockSpec((1, Hp), lambda i: (0, 0))
        mat_spec = pl.BlockSpec((Hp, Hp), lambda i: (0, 0))
        cparams = pltpu.CompilerParams(
            dimension_semantics=("parallel",),
            vmem_limit_bytes=self._VMEM_LIMIT)
        inv_h = 1.0 / H

        if weight is None:
            out = pl.pallas_call(
                functools.partial(_ln_kernel, eps=self.eps, inv_h=inv_h),
                out_shape=jax.ShapeDtypeStruct((rows_p, Hp), x.dtype),
                grid=grid,
                in_specs=[row_spec, vec_spec, vec_spec],
                out_specs=row_spec,
                compiler_params=cparams,
            )(x2, self._gamma_p, self._beta_p)
        else:
            w2 = weight.reshape(-1, H)
            assert w2.shape[0] == rows
            if needs_pad:
                w2 = jnp.pad(w2, ((0, rows_p - rows), (0, Hp - H)))
            # TODO(synk): for very large H on v7x (64 MiB VMEM/TC), tile the two
            # (H,H) MLP weights along the output dim with a second grid axis
            # (or keep them in HBM via memory_space=pl.ANY + manual DMA)
            # instead of keeping both fully resident in VMEM.
            out = pl.pallas_call(
                functools.partial(_ln_cond_kernel, eps=self.eps, inv_h=inv_h),
                out_shape=jax.ShapeDtypeStruct((rows_p, Hp), x.dtype),
                grid=grid,
                in_specs=[row_spec, row_spec,
                          mat_spec, vec_spec,
                          mat_spec, vec_spec],
                out_specs=row_spec,
                compiler_params=cparams,
            )(x2, w2, self._ww_t_p, self._bw_p, self._wb_t_p, self._bb_p)

        if needs_pad:
            out = out[:rows, :H]
        return out.reshape(orig_shape)


# ----------------------------------------------------------------------------
# Reference (plain JAX) for sanity check
# ----------------------------------------------------------------------------
def _ref_forward(mod, x, weight=None):
    u = jnp.mean(x, -1, keepdims=True)
    s = jnp.mean((x - u) ** 2, -1, keepdims=True)
    xhat = (x - u) / jnp.sqrt(s + mod.eps)
    if weight is not None:
        scale = weight @ mod.weight_mlp_w.T + mod.weight_mlp_b
        shift = weight @ mod.bias_mlp_w.T + mod.bias_mlp_b
        return scale * xhat + shift
    return mod.weight * xhat + mod.bias


if __name__ == "__main__":
    key = jax.random.PRNGKey(0)
    k_x, k_w, k_p = jax.random.split(key, 3)

    batch, seq, hidden = 2, 8, 32
    x = jax.random.normal(k_x, (batch, seq, hidden), jnp.float32)
    cond = jax.random.normal(k_w, (batch, seq, hidden), jnp.float32)

    mod = PallasLayerNorm(hidden, eps=1e-12, key=k_p)

    # Path 1: plain layernorm (weight=None)
    out_plain = jax.block_until_ready(mod(x))
    # Path 2: conditional scale/shift via the two Linear layers
    out_cond = jax.block_until_ready(mod(x, cond))

    ref_plain = _ref_forward(mod, x)
    ref_cond = _ref_forward(mod, x, cond)
    assert jnp.allclose(out_plain, ref_plain, atol=1e-5, rtol=1e-5)
    assert jnp.allclose(out_cond, ref_cond, atol=1e-4, rtol=1e-4)

    print("KERNEL_OK")
</pallas_src>

<mosaic_0001>
module attributes {stable_mosaic.version = 11 : i64} {
  func.func @_ln_kernel(%arg0: i32, %arg1: memref<16x128xf32, #tpu.memory_space<vmem>>, %arg2: memref<1x128xf32, #tpu.memory_space<vmem>>, %arg3: memref<1x128xf32, #tpu.memory_space<vmem>>, %arg4: memref<16x128xf32, #tpu.memory_space<vmem>>) attributes {dimension_semantics = [#tpu.dimension_semantics<parallel>], iteration_bounds = array<i64: 1>, scalar_prefetch = 0 : i64, scratch_operands = 0 : i64, tpu.core_type = #tpu.core_type<tc>, window_params = [{transform_indices = @transform_0, window_bounds = array<i64: 16, 128>}, {pipeline_mode = #tpu.pipeline_mode<synchronous>, transform_indices = @transform_1, window_bounds = array<i64: 1, 128>}, {pipeline_mode = #tpu.pipeline_mode<synchronous>, transform_indices = @transform_2, window_bounds = array<i64: 1, 128>}, {transform_indices = @transform_3, window_bounds = array<i64: 16, 128>}]} {
    %c0 = arith.constant 0 : index
    %c0_0 = arith.constant 0 : index
    %0 = vector.load %arg1[%c0, %c0_0] : memref<16x128xf32, #tpu.memory_space<vmem>>, vector<16x128xf32>
    %cst = arith.constant dense<0.000000e+00> : vector<16xf32>
    %1 = vector.multi_reduction <add>, %0, %cst [1] : vector<16x128xf32> to vector<16xf32>
    %2 = vector.shape_cast %1 : vector<16xf32> to vector<16x1xf32>
    %3 = arith.mulf %0, %0 : vector<16x128xf32>
    %cst_1 = arith.constant dense<0.000000e+00> : vector<16xf32>
    %4 = vector.multi_reduction <add>, %3, %cst_1 [1] : vector<16x128xf32> to vector<16xf32>
    %5 = vector.shape_cast %4 : vector<16xf32> to vector<16x1xf32>
    %cst_2 = arith.constant 3.125000e-02 : f32
    %6 = vector.broadcast %cst_2 : f32 to vector<16x1xf32>
    %7 = arith.mulf %2, %6 : vector<16x1xf32>
    %cst_3 = arith.constant 3.125000e-02 : f32
    %8 = vector.broadcast %cst_3 : f32 to vector<16x1xf32>
    %9 = arith.mulf %5, %8 : vector<16x1xf32>
    %10 = arith.mulf %7, %7 : vector<16x1xf32>
    %11 = arith.subf %9, %10 : vector<16x1xf32>
    %cst_4 = arith.constant 0.000000e+00 : f32
    %12 = vector.broadcast %cst_4 : f32 to vector<16x1xf32>
    %13 = arith.maximumf %11, %12 : vector<16x1xf32>
    %14 = vector.broadcast %7 : vector<16x1xf32> to vector<16x128xf32>
    %15 = arith.subf %0, %14 : vector<16x128xf32>
    %cst_5 = arith.constant 9.99999996E-13 : f32
    %16 = vector.broadcast %cst_5 : f32 to vector<16x1xf32>
    %17 = arith.addf %13, %16 : vector<16x1xf32>
    %18 = math.rsqrt %17 : vector<16x1xf32>
    %19 = vector.broadcast %18 : vector<16x1xf32> to vector<16x128xf32>
    %20 = arith.mulf %15, %19 : vector<16x128xf32>
    %c0_6 = arith.constant 0 : index
    %c0_7 = arith.constant 0 : index
    %21 = vector.load %arg2[%c0_6, %c0_7] : memref<1x128xf32, #tpu.memory_space<vmem>>, vector<1x128xf32>
    %c0_8 = arith.constant 0 : index
    %c0_9 = arith.constant 0 : index
    %22 = vector.load %arg3[%c0_8, %c0_9] : memref<1x128xf32, #tpu.memory_space<vmem>>, vector<1x128xf32>
    %23 = vector.broadcast %21 : vector<1x128xf32> to vector<16x128xf32>
    %24 = arith.mulf %23, %20 : vector<16x128xf32>
    %25 = vector.broadcast %22 : vector<1x128xf32> to vector<16x128xf32>
    %26 = arith.addf %24, %25 : vector<16x128xf32>
    %c0_10 = arith.constant 0 : index
    %c0_11 = arith.constant 0 : index
    %27 = vector.load %arg4[%c0_10, %c0_11] : memref<16x128xf32, #tpu.memory_space<vmem>>, vector<16x128xf32>
    tpu.vector_store %arg4[%c0_10, %c0_11], %26 {strides = array<i32>} : memref<16x128xf32, #tpu.memory_space<vmem>>, vector<16x128xf32>,
    return
  }
  func.func @transform_0(%arg0: i32) -> (i32, i32) {
    %c0_i32 = arith.constant 0 : i32
    %c0_i32_0 = arith.constant 0 : i32
    return %arg0, %c0_i32 : i32, i32
  }
  func.func @transform_1(%arg0: i32) -> (i32, i32) {
    %c0_i32 = arith.constant 0 : i32
    %c0_i32_0 = arith.constant 0 : i32
    %c0_i32_1 = arith.constant 0 : i32
    return %c0_i32, %c0_i32_0 : i32, i32
  }
  func.func @transform_2(%arg0: i32) -> (i32, i32) {
    %c0_i32 = arith.constant 0 : i32
    %c0_i32_0 = arith.constant 0 : i32
    %c0_i32_1 = arith.constant 0 : i32
    return %c0_i32, %c0_i32_0 : i32, i32
  }
  func.func @transform_3(%arg0: i32) -> (i32, i32) {
    %c0_i32 = arith.constant 0 : i32
    %c0_i32_0 = arith.constant 0 : i32
    return %arg0, %c0_i32 : i32, i32
  }
}

</mosaic_0001>

<llo_original>
// kernel: tpu_custom_call.1
$region0: #{tpu_custom_call.1}
  #allocation0 [shape = 'u32[]', space=smem, size = 0x4, offset = 0x4, fixed_abs, tag = 'smem constant byte address 0x4 - core index']
  #allocation1 [shape = 'u32[144,128]{1,0:T(1,128)}', space=vmem, size = 0x12000, scoped, tag = 'internal scratch']
  %s0 = inlined_call_operand.hbm [shape: f32[16,128], index: 0, kind: input, shape index: {}]
  %s1 = inlined_call_operand.vmem [shape: f32[1,128], index: 1, kind: input, shape index: {}]
  %s2 = inlined_call_operand.vmem [shape: f32[1,128], index: 2, kind: input, shape index: {}]
  %s3 = inlined_call_operand.hbm [shape: f32[16,128], index: 3, kind: output, shape index: {}]
  %s4 = sld [smem:[#allocation0]]
  $region26: #{tpu_custom_call.1} parent=0
    _
  %s6 = ssub.s32 1, %s4
  %s7 = scalar_select 0, %s6, %s4
  $region1: #{tpu_custom_call.1} parent=0
    #allocation2 [shape = 'u8[8192]{0}', space=vmem, size = 0x2000, scoped, tag = 'input window, operand 0, single buffered']
    #allocation3 [shape = 's32[1]{0}', space=sflag, size = 0x4, scoped, tag = 'scoped memory for tpu_custom_call.1']
    #allocation4 [shape = 's32[1]{0}', space=sflag, size = 0x4, scoped, tag = 'scoped memory for tpu_custom_call.1']
    #allocation5 [shape = 'u8[8192]{0}', space=vmem, size = 0x2000, scoped, tag = 'output window, operand 0, single buffered']
    %8 = vsyncpa [#allocation3], 0
    %9 = vsyncpa [#allocation4], 0
    // Predicated region
    $region2: #{tpu_custom_call.1} parent=1 // pred_check
      _
    $region3: #{tpu_custom_call.1} parent=1 // pred_check_branch
      %11 = sbr.rel (0) target = $region5
    $region4: #{tpu_custom_call.1} parent=1 // pred_region
      %s13 = ssub.s32 256, 256
      %14 = vsyncadd [#allocation3], %s13
      %s15 = sshll.u32 [#allocation2], 4
      %s16 = int_to_ptr.vmem [resolvable:$true] %s15
      %21 = dma.hbm_to_vmem [thread:$0]  %s0, 256, %s16, [#allocation3], 128, 128, 8
    $region5: #{tpu_custom_call.1} parent=1 // pred_fallthru
      _
    // Predicated region
    $region6: #{tpu_custom_call.1} parent=1 // pred_check
      _
    $region7: #{tpu_custom_call.1} parent=1 // pred_check_branch
      %23 = sbr.rel (0) target = $region9
    $region8: #{tpu_custom_call.1} parent=1 // pred_region
      _
    $region9: #{tpu_custom_call.1} parent=1 // pred_fallthru
      _
    // Predicated region
    $region10: #{tpu_custom_call.1} parent=1 // pred_check
      _
    $region11: #{tpu_custom_call.1} parent=1 // pred_check_branch
      %25 = sbr.rel (0) target = $region13
    $region12: #{tpu_custom_call.1} parent=1 // pred_region
      _
    $region13: #{tpu_custom_call.1} parent=1 // pred_fallthru
      _
    // Predicated region
    $region14: #{tpu_custom_call.1} parent=1 // pred_check
      _
    $region15: #{tpu_custom_call.1} parent=1 // pred_check_branch
      %27 = sbr.rel (0) target = $region17
    $region16: #{tpu_custom_call.1} parent=1 // pred_region
      %28 = dma.done [#allocation3], 256
    $region17: #{tpu_custom_call.1} parent=1 // pred_fallthru
      _
    %v29 = vld [vmem:[#allocation2] sm:$0xff]
    %v30 = vld [vmem:[#allocation2 + $0x8] sm:$0xff]
    %31 = vadd.xlane.f32.xlu0 %v29
    %v32 = vpop.xlane.xlu0 %31
    %33 = vadd.xlane.f32.xlu0 %v30
    %v34 = vpop.xlane.xlu0 %33
    %v35 = vmul.f32 %v29, %v29
    %v36 = vmul.f32 %v30, %v30
    %37 = vadd.xlane.f32.xlu0 %v35
    %v38 = vpop.xlane.xlu0 %37
    %39 = vadd.xlane.f32.xlu0 %v36
    %v40 = vpop.xlane.xlu0 %39
    %v41 = vmul.f32 %v32, 0.03125
    %v42 = vmul.f32 %v34, 0.03125
    %v43 = vmul.f32 %v38, 0.03125
    %v44 = vmul.f32 %v40, 0.03125
    %v45 = vmul.f32 %v41, %v41
    %v46 = vmul.f32 %v42, %v42
    %v47 = vsub.f32 %v43, %v45
    %v48 = vsub.f32 %v44, %v46
    %v49 = vmax.f32 %v47, 0.0
    %v50 = vmax.f32 %v48, 0.0
    %v51 = vsub.f32 %v29, %v41
    %v52 = vsub.f32 %v30, %v42
    %v53 = vadd.f32 %v49, 1e-12
    %v54 = vadd.f32 %v50, 1e-12
    %v55 = vrsqrt.pop %v53
    %v56 = vrsqrt.pop %v54
    %v57 = vmul.f32 %v51, %v55
    %v58 = vmul.f32 %v52, %v56
    %v59 = vld [vmem:[%s1] sm:$0x1]
    %v60 = vld [vmem:[%s2] sm:$0x1]
    %v62 = vlaneseq
    %v63 = vshrl.u32 %v62, 7
    %v64 = vsub.s32 0, %v63
    %v65 = vrot.slane %v59, %v64
    %v67 = vmul.f32 %v65, %v57
    %v68 = vmul.f32 %v65, %v58
    %v70 = vlaneseq
    %v71 = vshrl.u32 %v70, 7
    %v72 = vsub.s32 0, %v71
    %v73 = vrot.slane %v60, %v72
    %v75 = vadd.f32 %v67, %v73
    %v76 = vadd.f32 %v68, %v73
    %77 = vst [vmem:[#allocation5] sm:$0xff] %v75
    %78 = vst [vmem:[#allocation5 + $0x8] sm:$0xff] %v76
    // Predicated region
    $region18: #{tpu_custom_call.1} parent=1 // pred_check
      _
    $region19: #{tpu_custom_call.1} parent=1 // pred_check_branch
      %80 = sbr.rel (0) target = $region21
    $region20: #{tpu_custom_call.1} parent=1 // pred_region
      %s82 = ssub.s32 256, 256
      %83 = vsyncadd [#allocation4], %s82
      %s84 = sshll.u32 [#allocation5], 4
      %s85 = int_to_ptr.vmem [resolvable:$true] %s84
      %90 = dma.vmem_to_hbm [thread:$0]  %s85, 256, %s3, [#allocation4], 128, 128, 8
    $region21: #{tpu_custom_call.1} parent=1 // pred_fallthru
      _
    // Predicated region
    $region22: #{tpu_custom_call.1} parent=1 // pred_check
      _
    $region23: #{tpu_custom_call.1} parent=1 // pred_check_branch
      %92 = sbr.rel (0) target = $region25
    $region24: #{tpu_custom_call.1} parent=1 // pred_region
      %93 = dma.done [#allocation4], 256
    $region25: #{tpu_custom_call.1} parent=1 // pred_fallthru
      _
    %94 = vsyncpa [#allocation3], 1
    %95 = vsyncpa [#allocation4], 1

</llo_original>
